<compile_context>
chip_gen: v7x
topology: tpu7x:2x2x1
jax: 0.10.0
libtpu: 0.0.40
codegen_flags: <defaults>
</compile_context>

<pallas_src>
import functools
import math

import jax
import jax.numpy as jnp
from jax.experimental import pallas as pl
from jax.experimental.pallas import tpu as pltpu

_HIDDEN_PAD = 128     # lane width used for the (tiny, 3-wide) hidden layer
_MAX_BLOCK_B = 512    # max batch rows processed per grid step


def _round_up(x, m):
    return ((x + m - 1) // m) * m


def _apply_act(r, activation):
    if activation == "leaky_relu":
        return jnp.where(r >= 0, r, 0.01 * r)
    elif activation == "elu":
        return jnp.where(r >= 0, r, jnp.exp(jnp.minimum(r, 0.0)) - 1.0)
    elif activation == "sigmoid":
        return jax.nn.sigmoid(r)
    return r


def _nn2layer_kernel(x_ref, w1_ref, b1_ref, w2_ref, b2_ref, o_ref, *, activation):
    # Layer 1: (BB, F) @ (F, 128) + (1, 128)   -> MXU, then VPU/EUP activation
    h = jnp.dot(x_ref[...], w1_ref[...], preferred_element_type=jnp.float32)
    h = _apply_act(h + b1_ref[...], activation)
    # Layer 2: (BB, 128) @ (128, 3) + (1, 3)   (rows >= 3 of w2 are zero-padded)
    r = jnp.dot(h, w2_ref[...], preferred_element_type=jnp.float32)
    r = _apply_act(r + b2_ref[...], activation)
    r = jnp.clip(r, 0.0, 1.0)
    if activation == "elu":
        r = r + 1.0
    o_ref[...] = r


def prepare_params(w1, b1, w2, b2):
    """One-time zero-padding of the parameters into MXU/lane-friendly resident arrays.

    w1: (F, 3), b1: (3,), w2: (3, 3), b2: (3,)  ->
    w1_p: (F, 128), b1_p: (1, 128), w2_p: (128, 3), b2_p: (1, 3).
    Rows >= 3 of w2_p are zero so padded hidden lanes never reach the output.
    """
    F, H = w1.shape
    w1_p = jnp.zeros((F, _HIDDEN_PAD), jnp.float32).at[:, :H].set(w1)
    b1_p = jnp.zeros((1, _HIDDEN_PAD), jnp.float32).at[0, :H].set(b1)
    w2_p = jnp.zeros((_HIDDEN_PAD, H), jnp.float32).at[:H, :].set(w2)
    b2_p = b2.reshape(1, H).astype(jnp.float32)
    return w1_p, b1_p, w2_p, b2_p


@functools.partial(jax.jit, static_argnames=("activation",))
def nn_2layer_forward_batched(x, w1_p, b1_p, w2_p, b2_p, activation="sigmoid"):
    """x: (B, past_n_days, 4) float32.  Returns (B, 3) float32.

    Weights must already be padded via prepare_params (done once, kept resident).
    """
    B = x.shape[0]
    feats = x.reshape(B, -1).astype(jnp.float32)   # (B, F), F = past_n_days * 4
    F = feats.shape[1]
    H = w2_p.shape[1]                              # 3
    H_pad = w1_p.shape[1]                          # 128

    # Sublane-align the batch, then pick the largest single-step tile that fits.
    B_pad = _round_up(max(B, 8), 8)
    block_b = min(B_pad, _MAX_BLOCK_B)
    B_pad = _round_up(B_pad, block_b)
    if B_pad != B:
        feats = jnp.pad(feats, ((0, B_pad - B), (0, 0)))

    kernel = functools.partial(_nn2layer_kernel, activation=activation)

    out = pl.pallas_call(
        kernel,
        out_shape=jax.ShapeDtypeStruct((B_pad, H), jnp.float32),
        grid=(B_pad // block_b,),
        in_specs=[
            pl.BlockSpec((block_b, F), lambda i: (i, 0)),   # x: advances per step
            pl.BlockSpec((F, H_pad), lambda i: (0, 0)),     # w1: resident across grid
            pl.BlockSpec((1, H_pad), lambda i: (0, 0)),     # b1: resident
            pl.BlockSpec((H_pad, H), lambda i: (0, 0)),     # w2: resident
            pl.BlockSpec((1, H), lambda i: (0, 0)),         # b2: resident
        ],
        out_specs=pl.BlockSpec((block_b, H), lambda i: (i, 0)),
        compiler_params=pltpu.CompilerParams(
            dimension_semantics=("parallel",)),             # megacore on v7x
    )(feats, w1_p, b1_p, w2_p, b2_p)

    return out[:B]


def nn_2layer_forward(input_sird_values, w1_p, b1_p, w2_p, b2_p, activation="sigmoid"):
    """Single-sample API matching NN_2Layer.forward: (past_n_days, 4) -> (3,)."""
    out = nn_2layer_forward_batched(input_sird_values[None], w1_p, b1_p, w2_p, b2_p,
                                    activation=activation)
    return out[0]


def init_params(past_n_days, key):
    """Deterministic init matching SimplifiedLinear.reset_parameters:
       weights = 0.001 everywhere; bias ~ U(-1/sqrt(fan_in), 1/sqrt(fan_in)) where
       torch's fan_in for a (in_features, out_features) tensor is dim 1 = out_features."""
    in1, out1 = past_n_days * 4, 3
    in2, out2 = 3, 3
    k1, k2 = jax.random.split(key)

    w1 = jnp.full((in1, out1), 0.001, jnp.float32)
    bound1 = 1.0 / math.sqrt(out1)
    b1 = jax.random.uniform(k1, (out1,), jnp.float32, -bound1, bound1)

    w2 = jnp.full((in2, out2), 0.001, jnp.float32)
    bound2 = 1.0 / math.sqrt(out2)
    b2 = jax.random.uniform(k2, (out2,), jnp.float32, -bound2, bound2)
    return w1, b1, w2, b2


def nn_2layer_reference(x, w1, b1, w2, b2, activation="sigmoid"):
    feats = x.reshape(-1)
    r = feats @ w1 + b1
    r = _apply_act(r, activation)
    r = r @ w2 + b2
    r = _apply_act(r, activation)
    r = jnp.clip(r, 0.0, 1.0)
    if activation == "elu":
        r = r + 1.0
    return r


if __name__ == "__main__":
    past_n_days = 8

    key = jax.random.PRNGKey(0)
    kx, kp, ks = jax.random.split(key, 3)

    w1, b1, w2, b2 = init_params(past_n_days, kp)
    params = prepare_params(w1, b1, w2, b2)   # padded once, kept resident

    # Batched path: 16 independent (past_n_days, 4) inputs -> one grid step of 16 rows.
    xb = jax.random.uniform(kx, (16, past_n_days, 4), jnp.float32)
    out_b = jax.block_until_ready(
        nn_2layer_forward_batched(xb, *params, activation="sigmoid"))
    ref_b = jax.vmap(
        lambda x: nn_2layer_reference(x, w1, b1, w2, b2, "sigmoid"))(xb)
    assert out_b.shape == (16, 3)
    assert jnp.allclose(out_b, ref_b, atol=1e-5, rtol=1e-5), (out_b, ref_b)

    # Single-sample path (matches NN_2Layer.forward signature), exercising the elu
    # branch and the batch-padding path (B=1 -> padded to 8 rows).
    x1 = jax.random.uniform(ks, (past_n_days, 4), jnp.float32)
    out_1 = jax.block_until_ready(
        nn_2layer_forward(x1, *params, activation="elu"))
    ref_1 = nn_2layer_reference(x1, w1, b1, w2, b2, "elu")
    assert out_1.shape == (3,)
    assert jnp.allclose(out_1, ref_1, atol=1e-5, rtol=1e-5), (out_1, ref_1)

    print("KERNEL_OK")
</pallas_src>

<mosaic_0001>
module attributes {stable_mosaic.version = 11 : i64} {
  func.func @_nn2layer_kernel(%arg0: i32, %arg1: memref<16x32xf32, #tpu.memory_space<vmem>>, %arg2: memref<32x128xf32, #tpu.memory_space<vmem>>, %arg3: memref<1x128xf32, #tpu.memory_space<vmem>>, %arg4: memref<128x3xf32, #tpu.memory_space<vmem>>, %arg5: memref<1x3xf32, #tpu.memory_space<vmem>>, %arg6: memref<16x3xf32, #tpu.memory_space<vmem>>) attributes {dimension_semantics = [#tpu.dimension_semantics<parallel>], iteration_bounds = array<i64: 1>, scalar_prefetch = 0 : i64, scratch_operands = 0 : i64, tpu.core_type = #tpu.core_type<tc>, window_params = [{transform_indices = @transform_0, window_bounds = array<i64: 16, 32>}, {pipeline_mode = #tpu.pipeline_mode<synchronous>, transform_indices = @transform_1, window_bounds = array<i64: 32, 128>}, {pipeline_mode = #tpu.pipeline_mode<synchronous>, transform_indices = @transform_2, window_bounds = array<i64: 1, 128>}, {pipeline_mode = #tpu.pipeline_mode<synchronous>, transform_indices = @transform_3, window_bounds = array<i64: 128, 3>}, {pipeline_mode = #tpu.pipeline_mode<synchronous>, transform_indices = @transform_4, window_bounds = array<i64: 1, 3>}, {transform_indices = @transform_5, window_bounds = array<i64: 16, 3>}]} {
    %c0 = arith.constant 0 : index
    %c0_0 = arith.constant 0 : index
    %0 = vector.load %arg1[%c0, %c0_0] : memref<16x32xf32, #tpu.memory_space<vmem>>, vector<16x32xf32>
    %c0_1 = arith.constant 0 : index
    %c0_2 = arith.constant 0 : index
    %1 = vector.load %arg2[%c0_1, %c0_2] : memref<32x128xf32, #tpu.memory_space<vmem>>, vector<32x128xf32>
    %cst = arith.constant dense<0.000000e+00> : vector<16x128xf32>
    %2 = tpu.matmul %0, %1, %cst {dimension_numbers = #tpu.dot_dimension_numbers<[1], [0], [0], [1], [0, 0, 1, 1], [], []>} : vector<16x32xf32>, vector<32x128xf32>, vector<16x128xf32> -> vector<16x128xf32>
    %c0_3 = arith.constant 0 : index
    %c0_4 = arith.constant 0 : index
    %3 = vector.load %arg3[%c0_3, %c0_4] : memref<1x128xf32, #tpu.memory_space<vmem>>, vector<1x128xf32>
    %4 = vector.broadcast %3 : vector<1x128xf32> to vector<16x128xf32>
    %5 = arith.addf %2, %4 : vector<16x128xf32>
    %6 = arith.negf %5 : vector<16x128xf32>
    %7 = math.exp %6 : vector<16x128xf32>
    %cst_5 = arith.constant 1.000000e+00 : f32
    %8 = vector.broadcast %cst_5 : f32 to vector<16x128xf32>
    %9 = arith.addf %8, %7 : vector<16x128xf32>
    %10 = arith.divf %8, %9 : vector<16x128xf32>
    %c0_6 = arith.constant 0 : index
    %c0_7 = arith.constant 0 : index
    %11 = vector.load %arg4[%c0_6, %c0_7] : memref<128x3xf32, #tpu.memory_space<vmem>>, vector<128x3xf32>
    %cst_8 = arith.constant dense<0.000000e+00> : vector<16x3xf32>
    %12 = tpu.matmul %10, %11, %cst_8 {dimension_numbers = #tpu.dot_dimension_numbers<[1], [0], [0], [1], [0, 0, 1, 1], [], []>} : vector<16x128xf32>, vector<128x3xf32>, vector<16x3xf32> -> vector<16x3xf32>
    %c0_9 = arith.constant 0 : index
    %c0_10 = arith.constant 0 : index
    %13 = vector.load %arg5[%c0_9, %c0_10] : memref<1x3xf32, #tpu.memory_space<vmem>>, vector<1x3xf32>
    %14 = vector.broadcast %13 : vector<1x3xf32> to vector<16x3xf32>
    %15 = arith.addf %12, %14 : vector<16x3xf32>
    %16 = arith.negf %15 : vector<16x3xf32>
    %17 = math.exp %16 : vector<16x3xf32>
    %cst_11 = arith.constant 1.000000e+00 : f32
    %18 = vector.broadcast %cst_11 : f32 to vector<16x3xf32>
    %19 = arith.addf %18, %17 : vector<16x3xf32>
    %20 = arith.divf %18, %19 : vector<16x3xf32>
    %cst_12 = arith.constant 0.000000e+00 : f32
    %cst_13 = arith.constant 1.000000e+00 : f32
    %21 = vector.broadcast %cst_12 : f32 to vector<16x3xf32>
    %22 = arith.maximumf %21, %20 : vector<16x3xf32>
    %23 = vector.broadcast %cst_13 : f32 to vector<16x3xf32>
    %24 = arith.minimumf %23, %22 : vector<16x3xf32>
    %c0_14 = arith.constant 0 : index
    %c0_15 = arith.constant 0 : index
    %25 = vector.load %arg6[%c0_14, %c0_15] : memref<16x3xf32, #tpu.memory_space<vmem>>, vector<16x3xf32>
    tpu.vector_store %arg6[%c0_14, %c0_15], %24 {strides = array<i32>} : memref<16x3xf32, #tpu.memory_space<vmem>>, vector<16x3xf32>,
    return
  }
  func.func @transform_0(%arg0: i32) -> (i32, i32) {
    %c0_i32 = arith.constant 0 : i32
    %c0_i32_0 = arith.constant 0 : i32
    return %arg0, %c0_i32 : i32, i32
  }
  func.func @transform_1(%arg0: i32) -> (i32, i32) {
    %c0_i32 = arith.constant 0 : i32
    %c0_i32_0 = arith.constant 0 : i32
    %c0_i32_1 = arith.constant 0 : i32
    return %c0_i32, %c0_i32_0 : i32, i32
  }
  func.func @transform_2(%arg0: i32) -> (i32, i32) {
    %c0_i32 = arith.constant 0 : i32
    %c0_i32_0 = arith.constant 0 : i32
    %c0_i32_1 = arith.constant 0 : i32
    return %c0_i32, %c0_i32_0 : i32, i32
  }
  func.func @transform_3(%arg0: i32) -> (i32, i32) {
    %c0_i32 = arith.constant 0 : i32
    %c0_i32_0 = arith.constant 0 : i32
    %c0_i32_1 = arith.constant 0 : i32
    return %c0_i32, %c0_i32_0 : i32, i32
  }
  func.func @transform_4(%arg0: i32) -> (i32, i32) {
    %c0_i32 = arith.constant 0 : i32
    %c0_i32_0 = arith.constant 0 : i32
    %c0_i32_1 = arith.constant 0 : i32
    return %c0_i32, %c0_i32_0 : i32, i32
  }
  func.func @transform_5(%arg0: i32) -> (i32, i32) {
    %c0_i32 = arith.constant 0 : i32
    %c0_i32_0 = arith.constant 0 : i32
    return %arg0, %c0_i32 : i32, i32
  }
}

</mosaic_0001>

<llo_original>
// kernel: nn_2layer_forward_batched.1
$region0: #{nn_2layer_forward_batched.1}
  #allocation0 [shape = 'u32[]', space=smem, size = 0x4, offset = 0x4, fixed_abs, tag = 'smem constant byte address 0x4 - core index']
  #allocation1 [shape = 'u32[144,128]{1,0:T(1,128)}', space=vmem, size = 0x12000, scoped, tag = 'internal scratch']
  %s0 = inlined_call_operand.vmem [shape: f32[16,32], index: 0, kind: input, shape index: {}]
  %s1 = inlined_call_operand.vmem [shape: f32[32,128], index: 1, kind: input, shape index: {}]
  %s2 = inlined_call_operand.vmem [shape: f32[1,128], index: 2, kind: input, shape index: {}]
  %s3 = inlined_call_operand.vmem [shape: f32[128,3], index: 3, kind: input, shape index: {}]
  %s4 = inlined_call_operand.vmem [shape: f32[1,3], index: 4, kind: input, shape index: {}]
  %s5 = inlined_call_operand.vmem [shape: f32[16,3], index: 5, kind: output, shape index: {}]
  %s6 = sld [smem:[#allocation0]]
  $region30: #{nn_2layer_forward_batched.1} parent=0
    _
  %s8 = ssub.s32 1, %s6
  %s9 = scalar_select 0, %s8, %s6
  // Predicated region
  $region2: #{nn_2layer_forward_batched.1} parent=0 // pred_check
    _
  $region3: #{nn_2layer_forward_batched.1} parent=0 // pred_check_branch
    %11 = sbr.rel (0) target = $region5
  $region4: #{nn_2layer_forward_batched.1} parent=0 // pred_region
    _
  $region5: #{nn_2layer_forward_batched.1} parent=0 // pred_fallthru
    _
  // Predicated region
  $region6: #{nn_2layer_forward_batched.1} parent=0 // pred_check
    _
  $region7: #{nn_2layer_forward_batched.1} parent=0 // pred_check_branch
    %13 = sbr.rel (0) target = $region9
  $region8: #{nn_2layer_forward_batched.1} parent=0 // pred_region
    _
  $region9: #{nn_2layer_forward_batched.1} parent=0 // pred_fallthru
    _
  // Predicated region
  $region10: #{nn_2layer_forward_batched.1} parent=0 // pred_check
    _
  $region11: #{nn_2layer_forward_batched.1} parent=0 // pred_check_branch
    %15 = sbr.rel (0) target = $region13
  $region12: #{nn_2layer_forward_batched.1} parent=0 // pred_region
    _
  $region13: #{nn_2layer_forward_batched.1} parent=0 // pred_fallthru
    _
  // Predicated region
  $region14: #{nn_2layer_forward_batched.1} parent=0 // pred_check
    _
  $region15: #{nn_2layer_forward_batched.1} parent=0 // pred_check_branch
    %17 = sbr.rel (0) target = $region17
  $region16: #{nn_2layer_forward_batched.1} parent=0 // pred_region
    _
  $region17: #{nn_2layer_forward_batched.1} parent=0 // pred_fallthru
    _
  // Predicated region
  $region18: #{nn_2layer_forward_batched.1} parent=0 // pred_check
    _
  $region19: #{nn_2layer_forward_batched.1} parent=0 // pred_check_branch
    %19 = sbr.rel (0) target = $region21
  $region20: #{nn_2layer_forward_batched.1} parent=0 // pred_region
    _
  $region21: #{nn_2layer_forward_batched.1} parent=0 // pred_fallthru
    _
  %v20 = vld [vmem:[%s0] sm:$0xff]
  %v21 = vld [vmem:[%s0 + $0x8] sm:$0xff]
  %v22 = vld [vmem:[%s1] sm:$0xff]
  %v23 = vld [vmem:[%s1 + $0x8] sm:$0xff]
  %v24 = vld [vmem:[%s1 + $0x10] sm:$0xff]
  %v25 = vld [vmem:[%s1 + $0x18] sm:$0xff]
  %v26 = vld [vmem:[%s2] sm:$0x1]
  %v28 = vlaneseq
  %v29 = vshrl.u32 %v28, 7
  %v30 = vsub.s32 0, %v29
  %v31 = vrot.slane %v26, %v30
  %vm33 = vcmask 261120
  %v35 = vsel %vm33, %v20, 0
  %v38 = vsel %vm33, %v21, 0
  %40 = vmatprep.subr.mxu0 0.0
  %41 = vmatpush1.msra.mxu0 %v22
  %42 = vmatprep.subr.mxu0 0.0
  %43 = vmatpush1.msra.mxu0 %v23
  %44 = vmatprep.subr.mxu0 0.0
  %45 = vmatpush1.msra.mxu0 %v24
  %46 = vmatprep.subr.mxu0 0.0
  %47 = vmatpush1.msra.mxu0 %v25
  %48 = vmatprep.subr.mxu0 0.0
  %49 = vmatpush1.msra.mxu0 0.0
  %50 = vmatprep.subr.mxu0 0.0
  %51 = vmatpush1.msra.mxu0 0.0
  %52 = vmatprep.subr.mxu0 0.0
  %53 = vmatpush1.msra.mxu0 0.0
  %54 = vmatprep.subr.mxu0 0.0
  %55 = vmatpush1.msra.mxu0 0.0
  %56 = vmatprep.subr.mxu0 0.0
  %57 = vmatpush1.msra.mxu0 0.0
  %58 = vmatprep.subr.mxu0 0.0
  %59 = vmatpush1.msra.mxu0 0.0
  %60 = vmatprep.subr.mxu0 0.0
  %61 = vmatpush1.msra.mxu0 0.0
  %62 = vmatprep.subr.mxu0 0.0
  %63 = vmatpush1.msra.mxu0 0.0
  %64 = vmatprep.subr.mxu0 0.0
  %65 = vmatpush1.msra.mxu0 0.0
  %66 = vmatprep.subr.mxu0 0.0
  %67 = vmatpush1.msra.mxu0 0.0
  %68 = vmatprep.subr.mxu0 0.0
  %69 = vmatpush1.msra.mxu0 0.0
  %70 = vmatprep.subr.mxu0 0.0
  %71 = vmatpush1.msra.mxu0 0.0
  %72 = vmatprep.subr.mxu0 0.0
  %73 = vmatpush1.msra.mxu0 0.0
  %74 = vmatprep.subr.mxu0 0.0
  %75 = vmatpush1.msra.mxu0 0.0
  %76 = vmatprep.subr.mxu0 0.0
  %77 = vmatpush1.msra.mxu0 0.0
  %78 = vmatprep.subr.mxu0 0.0
  %79 = vmatpush1.msra.mxu0 0.0
  %80 = vmatprep.subr.mxu0 0.0
  %81 = vmatpush1.msra.mxu0 0.0
  %82 = vmatprep.subr.mxu0 0.0
  %83 = vmatpush1.msra.mxu0 0.0
  %84 = vmatprep.subr.mxu0 0.0
  %85 = vmatpush1.msra.mxu0 0.0
  %86 = vmatprep.subr.mxu0 0.0
  %87 = vmatpush1.msra.mxu0 0.0
  %88 = vmatprep.subr.mxu0 0.0
  %89 = vmatpush1.msra.mxu0 0.0
  %90 = vmatprep.subr.mxu0 0.0
  %91 = vmatpush1.msra.mxu0 0.0
  %92 = vmatprep.subr.mxu0 0.0
  %93 = vmatpush1.msra.mxu0 0.0
  %94 = vmatprep.subr.mxu0 0.0
  %95 = vmatpush1.msra.mxu0 0.0
  %96 = vmatprep.subr.mxu0 0.0
  %97 = vmatpush1.msra.mxu0 0.0
  %98 = vmatprep.subr.mxu0 0.0
  %99 = vmatpush1.msra.mxu0 0.0
  %100 = vmatprep.subr.mxu0 0.0
  %101 = vmatpush1.msra.mxu0 0.0
  %102 = vmatprep.subr.mxu0 0.0
  %103 = vmatpush1.msra.mxu0 0.0
  %104 = vmatprep.mubr.f32.mxu0 0.0
  %105 = vmatmul.mubr.f32.gmra.mrb[0].mxu0 %v35
  %v106 = vpop.f32.mrb[0].mxu0
  %v107 = vadd.f32 %v31, %v106
  %v108 = vpop.f32.mrb[0].mxu0
  %109 = vmatprep.mubr.f32.mxu0 0.0
  %110 = vmatmul.mubr.f32.gmra.mrb[0].mxu0 %v38
  %v111 = vpop.f32.mrb[0].mxu0
  %v112 = vadd.f32 %v31, %v111
  %v113 = vpop.f32.mrb[0].mxu0
  %114 = vdwg.mxu0
  %v115 = vxor.u32 %v107, 2147483648
  %v116 = vxor.u32 %v112, 2147483648
  %v117 = vmul.f32 %v115, 1.442695
  %v118 = vpow.pop %v117
  %v119 = vmul.f32 %v116, 1.442695
  %v120 = vpow.pop %v119
  %v121 = vadd.f32 %v118, 1.0
  %v122 = vadd.f32 %v120, 1.0
  %v123 = vrcp.pop %v121
  %v124 = vmul.f32 1.0, %v123
  %v125 = vrcp.pop %v122
  %v126 = vmul.f32 1.0, %v125
  %v127 = vld [vmem:[%s3] sm:$0xff]
  %v128 = vld [vmem:[%s3 + $0x8] sm:$0xff]
  %v129 = vld [vmem:[%s3 + $0x10] sm:$0xff]
  %v130 = vld [vmem:[%s3 + $0x18] sm:$0xff]
  %v131 = vld [vmem:[%s3 + $0x20] sm:$0xff]
  %v132 = vld [vmem:[%s3 + $0x28] sm:$0xff]
  %v133 = vld [vmem:[%s3 + $0x30] sm:$0xff]
  %v134 = vld [vmem:[%s3 + $0x38] sm:$0xff]
  %v135 = vld [vmem:[%s3 + $0x40] sm:$0xff]
  %v136 = vld [vmem:[%s3 + $0x48] sm:$0xff]
  %v137 = vld [vmem:[%s3 + $0x50] sm:$0xff]
  %v138 = vld [vmem:[%s3 + $0x58] sm:$0xff]
  %v139 = vld [vmem:[%s3 + $0x60] sm:$0xff]
  %v140 = vld [vmem:[%s3 + $0x68] sm:$0xff]
  %v141 = vld [vmem:[%s3 + $0x70] sm:$0xff]
  %v142 = vld [vmem:[%s3 + $0x78] sm:$0xff]
  %v143 = vld [vmem:[%s4] sm:$0x1]
  %v145 = vlaneseq
  %v146 = vshrl.u32 %v145, 7
  %v147 = vsub.s32 0, %v146
  %v148 = vrot.slane %v143, %v147
  %150 = vmatprep.subr.mxu0 0.0
  %151 = vmatpush1.msra.mxu0 %v127
  %152 = vmatprep.subr.mxu0 0.0
  %153 = vmatpush1.msra.mxu0 %v128
  %154 = vmatprep.subr.mxu0 0.0
  %155 = vmatpush1.msra.mxu0 %v129
  %156 = vmatprep.subr.mxu0 0.0
  %157 = vmatpush1.msra.mxu0 %v130
  %158 = vmatprep.subr.mxu0 0.0
  %159 = vmatpush1.msra.mxu0 %v131
  %160 = vmatprep.subr.mxu0 0.0
  %161 = vmatpush1.msra.mxu0 %v132
  %162 = vmatprep.subr.mxu0 0.0
  %163 = vmatpush1.msra.mxu0 %v133
  %164 = vmatprep.subr.mxu0 0.0
  %165 = vmatpush1.msra.mxu0 %v134
  %166 = vmatprep.subr.mxu0 0.0
  %167 = vmatpush1.msra.mxu0 %v135
  %168 = vmatprep.subr.mxu0 0.0
  %169 = vmatpush1.msra.mxu0 %v136
  %170 = vmatprep.subr.mxu0 0.0
  %171 = vmatpush1.msra.mxu0 %v137
  %172 = vmatprep.subr.mxu0 0.0
  %173 = vmatpush1.msra.mxu0 %v138
  %174 = vmatprep.subr.mxu0 0.0
  %175 = vmatpush1.msra.mxu0 %v139
  %176 = vmatprep.subr.mxu0 0.0
  %177 = vmatpush1.msra.mxu0 %v140
  %178 = vmatprep.subr.mxu0 0.0
  %179 = vmatpush1.msra.mxu0 %v141
  %180 = vmatprep.subr.mxu0 0.0
  %181 = vmatpush1.msra.mxu0 %v142
  %182 = vmatprep.subr.mxu0 0.0
  %183 = vmatpush1.msra.mxu0 0.0
  %184 = vmatprep.subr.mxu0 0.0
  %185 = vmatpush1.msra.mxu0 0.0
  %186 = vmatprep.subr.mxu0 0.0
  %187 = vmatpush1.msra.mxu0 0.0
  %188 = vmatprep.subr.mxu0 0.0
  %189 = vmatpush1.msra.mxu0 0.0
  %190 = vmatprep.subr.mxu0 0.0
  %191 = vmatpush1.msra.mxu0 0.0
  %192 = vmatprep.subr.mxu0 0.0
  %193 = vmatpush1.msra.mxu0 0.0
  %194 = vmatprep.subr.mxu0 0.0
  %195 = vmatpush1.msra.mxu0 0.0
  %196 = vmatprep.subr.mxu0 0.0
  %197 = vmatpush1.msra.mxu0 0.0
  %198 = vmatprep.subr.mxu0 0.0
  %199 = vmatpush1.msra.mxu0 0.0
  %200 = vmatprep.subr.mxu0 0.0
  %201 = vmatpush1.msra.mxu0 0.0
  %202 = vmatprep.subr.mxu0 0.0
  %203 = vmatpush1.msra.mxu0 0.0
  %204 = vmatprep.subr.mxu0 0.0
  %205 = vmatpush1.msra.mxu0 0.0
  %206 = vmatprep.subr.mxu0 0.0
  %207 = vmatpush1.msra.mxu0 0.0
  %208 = vmatprep.subr.mxu0 0.0
  %209 = vmatpush1.msra.mxu0 0.0
  %210 = vmatprep.subr.mxu0 0.0
  %211 = vmatpush1.msra.mxu0 0.0
  %212 = vmatprep.subr.mxu0 0.0
  %213 = vmatpush1.msra.mxu0 0.0
  %214 = vmatprep.mubr.f32.mxu0 0.0
  %215 = vmatmul.mubr.f32.gmra.mrb[0].mxu0 %v124
  %v216 = vpop.f32.mrb[0].mxu0
  %v217 = vadd.f32 %v148, %v216
  %v218 = vpop.f32.mrb[0].mxu0
  %219 = vmatprep.mubr.f32.mxu0 0.0
  %220 = vmatmul.mubr.f32.gmra.mrb[0].mxu0 %v126
  %v221 = vpop.f32.mrb[0].mxu0
  %v222 = vadd.f32 %v148, %v221
  %v223 = vpop.f32.mrb[0].mxu0
  %224 = vdwg.mxu0
  %v225 = vxor.u32 %v217, 2147483648
  %v226 = vxor.u32 %v222, 2147483648
  %v227 = vmul.f32 %v225, 1.442695
  %v228 = vpow.pop %v227
  %v229 = vmul.f32 %v226, 1.442695
  %v230 = vpow.pop %v229
  %v231 = vadd.f32 %v228, 1.0
  %v232 = vadd.f32 %v230, 1.0
  %v233 = vrcp.pop %v231
  %v234 = vmul.f32 1.0, %v233
  %v235 = vrcp.pop %v232
  %v236 = vmul.f32 1.0, %v235
  %v237 = vmax.f32 %v234, 0.0
  %v238 = vmax.f32 %v236, 0.0
  %v239 = vmin.f32 %v237, 1.0
  %v240 = vmin.f32 %v238, 1.0
  %vm241 = vcmask 23552
  %242 = vst.msk [vmem:[%s5] sm:$0xff] %vm241, %v239
  %243 = vst.msk [vmem:[%s5 + $0x8] sm:$0xff] %vm241, %v240
  // Predicated region
  $region22: #{nn_2layer_forward_batched.1} parent=0 // pred_check
    _
  $region23: #{nn_2layer_forward_batched.1} parent=0 // pred_check_branch
    %245 = sbr.rel (0) target = $region25
  $region24: #{nn_2layer_forward_batched.1} parent=0 // pred_region
    _
  $region25: #{nn_2layer_forward_batched.1} parent=0 // pred_fallthru
    _
  // Predicated region
  $region26: #{nn_2layer_forward_batched.1} parent=0 // pred_check
    _
  $region27: #{nn_2layer_forward_batched.1} parent=0 // pred_check_branch
    %247 = sbr.rel (0) target = $region29
  $region28: #{nn_2layer_forward_batched.1} parent=0 // pred_region
    _
  $region29: #{nn_2layer_forward_batched.1} parent=0 // pred_fallthru
    _

</llo_original>
